<compile_context>
chip_gen: v6e
topology: v6e:2x2x1
jax: 0.10.0
libtpu: 0.0.40
codegen_flags: <defaults>
</compile_context>

<pallas_src>
import functools

import jax
import jax.numpy as jnp
from jax import lax
from jax.experimental import pallas as pl
from jax.experimental.pallas import tpu as pltpu

ALPHA = 0.25
GAMMA = 2.0


def _focal_loss_kernel(logits_ref, tgt_ref, loss_sum_ref, cnt_sum_ref, *,
                       alpha, gamma, n_rows, n_inner, tile_rows, use_mxu_sums):
    # logits_ref   : (TM, C) f32/bf16/f16 VMEM tile.  The ragged last tile (and
    #                any duplicated tile from the outer split) contains garbage
    #                rows -- they are dropped via the global-row-index mask.
    # tgt_ref      : (TM, 1) int32 VMEM tile; target class, or -1 for rows the
    #                caller masked out.
    # loss_sum_ref : (1, 1, 1) f32 accumulator (one per outer-grid index)
    # cnt_sum_ref  : (1, 1, 1) f32 accumulator (count of valid rows)
    inner = pl.program_id(1)

    @pl.when(inner == 0)
    def _():
        loss_sum_ref[...] = jnp.zeros_like(loss_sum_ref)
        cnt_sum_ref[...] = jnp.zeros_like(cnt_sum_ref)

    logits = logits_ref[...].astype(jnp.float32)              # (TM, C)
    tgt = tgt_ref[...]                                        # (TM, 1) int32

    # Global row ids of this tile, computed from the UNclamped tile index:
    # rows >= n_rows are ragged-tail / duplicated-tile garbage.
    tile = pl.program_id(0) * n_inner + inner
    row_ids = tile * tile_rows + lax.broadcasted_iota(jnp.int32, tgt.shape, 0)
    valid = (tgt >= 0) & (row_ids < n_rows)                   # (TM, 1) bool

    # Numerically-stable softmax pieces (shared by CE; p comes from exp(-ce)).
    row_max = jnp.max(logits, axis=-1, keepdims=True)         # (TM, 1)
    e = jnp.exp(logits - row_max)                             # (TM, C)

    # Gather the target-class logit via iota compare.  NOTE: targets outside
    # [0, C) other than the -1 sentinel silently yield picked_logit == 0
    # (loss = alpha*w*lse) instead of torch's F.cross_entropy behaviour.
    col = lax.broadcasted_iota(jnp.int32, logits.shape, 1)    # (TM, C)
    picked = jnp.where(col == tgt, logits, 0.0)               # (TM, C)

    if use_mxu_sums:
        # v7x-targeted: offload the lane sums to the otherwise-idle MXU, leaving
        # only row_max on the XLU.  HIGHEST precision keeps full f32 accuracy.
        ones_col = jnp.ones((logits.shape[-1], 1), jnp.float32)
        sum_e = jnp.dot(e, ones_col, precision=lax.Precision.HIGHEST,
                        preferred_element_type=jnp.float32)
        picked_logit = jnp.dot(picked, ones_col, precision=lax.Precision.HIGHEST,
                               preferred_element_type=jnp.float32)
    else:
        sum_e = jnp.sum(e, axis=-1, keepdims=True)            # (TM, 1)
        picked_logit = jnp.sum(picked, axis=-1, keepdims=True)

    lse = row_max + jnp.log(sum_e)                            # (TM, 1)
    ce = lse - picked_logit                                   # per-row CE
    p = jnp.exp(-ce)                                          # (TM, 1) tiny EUP op;
    one_m_p = 1.0 - p                                         # replaces picked_e/sum_e

    g = float(gamma)
    if g == 2.0:                                              # default: one VPU mul
        w = one_m_p * one_m_p
    elif g == float(int(g)) and 0.0 <= g <= 8.0:              # other integer gammas
        w = one_m_p
        for _ in range(int(g) - 1):
            w = w * one_m_p
        if int(g) == 0:
            w = jnp.ones_like(one_m_p)
    else:
        w = one_m_p ** g                                      # generic fallback

    loss = alpha * w * ce
    # True select (NOT loss * valid): garbage tail rows may carry NaN/Inf and a
    # select does not propagate them from the discarded branch.
    loss = jnp.where(valid, loss, 0.0)

    loss_sum_ref[...] += jnp.sum(loss).reshape(1, 1, 1)
    cnt_sum_ref[...] += jnp.sum(valid.astype(jnp.float32)).reshape(1, 1, 1)


def _vmem_budgets():
    """Per-generation (tile working-set budget, vmem_limit_bytes)."""
    try:
        cap = int(pltpu.get_tpu_info().vmem_capacity_bytes)
    except Exception:
        cap = 64 * 1024 * 1024                    # conservative (v7x per-TC VMEM)
    if cap >= 96 * 1024 * 1024:                   # v5e / v6e: 128 MiB VMEM
        return 48 * 1024 * 1024, 64 * 1024 * 1024
    return 24 * 1024 * 1024, 32 * 1024 * 1024     # v7x: 64 MiB VMEM


def _pick_tile_rows(M, C, itemsize, budget, max_tm=16384):
    """Largest row tile (multiple of 8) whose working set -- double-buffered
    input tiles plus ~5 full-tile f32/i32 in-kernel temporaries -- fits."""
    c_pad = ((C + 127) // 128) * 128              # lanes the logits tile occupies
    bytes_per_row = (2 * (c_pad * itemsize + 128 * 4)   # 2 bufs * (logits + tgt col)
                     + 5 * c_pad * 4)                   # in-kernel temporaries
    tm = budget // bytes_per_row
    m_pad8 = ((M + 7) // 8) * 8
    tm = int(max(8, min(max_tm, tm, m_pad8)))
    return (tm // 8) * 8


def focal_loss(predictions, targets, mask=None, *, alpha=ALPHA, gamma=GAMMA,
               tile_rows=None, use_mxu_sums=False):
    """predictions: (B, N, C) logits; targets: (B, N) int labels;
    mask: (B, N) boolean validity mask or None."""
    B, N, C = predictions.shape
    M = B * N

    logits2d = predictions.reshape(M, C)
    # Keep narrow float dtypes (bf16 / f16) end-to-end; upcast inside the
    # kernel.  Only non-float inputs get a wrapper cast.
    if not jnp.issubdtype(logits2d.dtype, jnp.floating):
        logits2d = logits2d.astype(jnp.float32)

    tgt = targets.reshape(M, 1).astype(jnp.int32)
    if mask is not None:
        # Pack the boolean mask into the target column (-1 = masked out) so
        # only one lane-padded side array is DMA'd.
        tgt = jnp.where(mask.reshape(M, 1).astype(bool), tgt, -1)

    budget, vmem_limit = _vmem_budgets()
    if tile_rows is None:
        tm = _pick_tile_rows(M, C, jnp.dtype(logits2d.dtype).itemsize, budget)
    else:
        tm = max(8, ((int(tile_rows) + 7) // 8) * 8)

    total_tiles = -(-M // tm)
    n_outer = 2 if total_tiles >= 2 else 1        # 2-way megacore split (v7x)
    n_inner = -(-total_tiles // n_outer)

    last_tile = total_tiles - 1
    if n_outer * n_inner > total_tiles:
        # Odd tile count: the extra grid step re-reads the last real tile (its
        # rows are masked in-kernel via the unclamped row index).
        def tile_idx(c, i):
            return jnp.minimum(c * n_inner + i, last_tile)
    else:
        def tile_idx(c, i):
            return c * n_inner + i

    kernel = functools.partial(
        _focal_loss_kernel, alpha=float(alpha), gamma=float(gamma),
        n_rows=M, n_inner=n_inner, tile_rows=tm, use_mxu_sums=use_mxu_sums)

    grid_spec = pltpu.PrefetchScalarGridSpec(
        num_scalar_prefetch=0,
        grid=(n_outer, n_inner),
        in_specs=[
            pl.BlockSpec((tm, C), lambda c, i: (tile_idx(c, i), 0)),
            pl.BlockSpec((tm, 1), lambda c, i: (tile_idx(c, i), 0)),
        ],
        out_specs=(
            pl.BlockSpec((1, 1, 1), lambda c, i: (c, 0, 0)),
            pl.BlockSpec((1, 1, 1), lambda c, i: (c, 0, 0)),
        ),
    )

    loss_parts, cnt_parts = pl.pallas_call(
        kernel,
        out_shape=(jax.ShapeDtypeStruct((n_outer, 1, 1), jnp.float32),
                   jax.ShapeDtypeStruct((n_outer, 1, 1), jnp.float32)),
        grid_spec=grid_spec,
        compiler_params=pltpu.CompilerParams(
            dimension_semantics=("parallel", "arbitrary"),
            vmem_limit_bytes=vmem_limit,
        ),
    )(logits2d, tgt)

    loss_sum = jnp.sum(loss_parts)
    if mask is None:
        return loss_sum / jnp.float32(M)              # torch: loss.mean()
    return loss_sum / (jnp.sum(cnt_parts) + 1e-6)     # torch: sum/(mask.sum()+1e-6)


def _focal_loss_ref(predictions, targets, mask=None, *, alpha=ALPHA, gamma=GAMMA):
    """Pure-JAX reference mirroring the documented torch forward."""
    logits = predictions.astype(jnp.float32)
    lse = jax.nn.logsumexp(logits, axis=-1)
    picked = jnp.take_along_axis(logits, targets[..., None].astype(jnp.int32),
                                 axis=-1)[..., 0]
    ce = lse - picked
    p = jnp.exp(-ce)
    loss = alpha * (1.0 - p) ** gamma * ce
    if mask is not None:
        m = mask.astype(jnp.float32)
        return jnp.sum(loss * m) / (jnp.sum(m) + 1e-6)
    return jnp.mean(loss)


if __name__ == "__main__":
    key = jax.random.PRNGKey(0)
    k1, k2, k3, k4, k5, k6 = jax.random.split(key, 6)

    # Small case (single, partial-free tile).
    B, N, C = 2, 8, 32
    predictions = jax.random.normal(k1, (B, N, C), dtype=jnp.float32)
    targets = jax.random.randint(k2, (B, N), 0, C, dtype=jnp.int32)
    mask = jax.random.uniform(k3, (B, N)) > 0.3

    out_masked = jax.block_until_ready(focal_loss(predictions, targets, mask))
    ref_masked = _focal_loss_ref(predictions, targets, mask)
    out_mean = jax.block_until_ready(focal_loss(predictions, targets, None))
    ref_mean = _focal_loss_ref(predictions, targets, None)
    assert jnp.allclose(out_masked, ref_masked, rtol=5e-5, atol=1e-6), (out_masked, ref_masked)
    assert jnp.allclose(out_mean, ref_mean, rtol=5e-5, atol=1e-6), (out_mean, ref_mean)

    # bf16 passthrough (no wrapper upcast; kernel upcasts in-VMEM).
    pred_bf16 = predictions.astype(jnp.bfloat16)
    out_bf16 = jax.block_until_ready(focal_loss(pred_bf16, targets, mask))
    ref_bf16 = _focal_loss_ref(pred_bf16, targets, mask)
    assert jnp.allclose(out_bf16, ref_bf16, rtol=5e-5, atol=1e-6), (out_bf16, ref_bf16)

    # Larger case, forced small tile: multi-tile accumulation, 2-way outer
    # split, and a ragged (partial) last tile handled without any padding copy.
    B2, N2, C2 = 3, 70, 32
    pred2 = jax.random.normal(k4, (B2, N2, C2), dtype=jnp.float32)
    tgt2 = jax.random.randint(k5, (B2, N2), 0, C2, dtype=jnp.int32)
    mask2 = jax.random.uniform(k6, (B2, N2)) > 0.5

    out2_masked = jax.block_until_ready(focal_loss(pred2, tgt2, mask2, tile_rows=64))
    ref2_masked = _focal_loss_ref(pred2, tgt2, mask2)
    out2_mean = jax.block_until_ready(focal_loss(pred2, tgt2, None, tile_rows=64))
    ref2_mean = _focal_loss_ref(pred2, tgt2, None)
    assert jnp.allclose(out2_masked, ref2_masked, rtol=5e-5, atol=1e-6), (out2_masked, ref2_masked)
    assert jnp.allclose(out2_mean, ref2_mean, rtol=5e-5, atol=1e-6), (out2_mean, ref2_mean)

    # Odd tile count (5 tiles on a 2-way outer split): exercises the clamped
    # index_map + masked duplicated tile.
    out3_masked = jax.block_until_ready(focal_loss(pred2, tgt2, mask2, tile_rows=48))
    assert jnp.allclose(out3_masked, ref2_masked, rtol=5e-5, atol=1e-6), (out3_masked, ref2_masked)

    # Default (auto) tile sizing on the larger case: single partial tile.
    out4_mean = jax.block_until_ready(focal_loss(pred2, tgt2, None))
    assert jnp.allclose(out4_mean, ref2_mean, rtol=5e-5, atol=1e-6), (out4_mean, ref2_mean)

    print("KERNEL_OK")
</pallas_src>

<mosaic_0001>
module attributes {stable_mosaic.version = 11 : i64} {
  func.func @_focal_loss_kernel(%arg0: i32, %arg1: i32, %arg2: memref<16x32xf32, #tpu.memory_space<vmem>>, %arg3: memref<16x1xi32, #tpu.memory_space<vmem>>, %arg4: memref<1x1x1xf32, #tpu.memory_space<vmem>>, %arg5: memref<1x1x1xf32, #tpu.memory_space<vmem>>) attributes {dimension_semantics = [#tpu.dimension_semantics<parallel>, #tpu.dimension_semantics<arbitrary>], iteration_bounds = array<i64: 1, 1>, scalar_prefetch = 0 : i64, scratch_operands = 0 : i64, tpu.core_type = #tpu.core_type<tc>, window_params = [{transform_indices = @transform_0, window_bounds = array<i64: 16, 32>}, {transform_indices = @transform_1, window_bounds = array<i64: 16, 1>}, {transform_indices = @transform_2, window_bounds = array<i64: 1, 1, 1>}, {transform_indices = @transform_3, window_bounds = array<i64: 1, 1, 1>}]} {
    %c0_i32 = arith.constant 0 : i32
    %0 = arith.cmpi eq, %arg1, %c0_i32 : i32
    %1 = arith.extui %0 : i1 to i32
    %c0_i32_0 = arith.constant 0 : i32
    %2 = arith.cmpi ne, %1, %c0_i32_0 : i32
    scf.if %2 {
      %cst_27 = arith.constant 0.000000e+00 : f32
      %62 = vector.broadcast %cst_27 : f32 to vector<1x1x1xf32>
      %c0_28 = arith.constant 0 : index
      %c0_29 = arith.constant 0 : index
      %c0_30 = arith.constant 0 : index
      %63 = vector.load %arg4[%c0_28, %c0_29, %c0_30] : memref<1x1x1xf32, #tpu.memory_space<vmem>>, vector<1x1x1xf32>
      tpu.vector_store %arg4[%c0_28, %c0_29, %c0_30], %62 {strides = array<i32>} : memref<1x1x1xf32, #tpu.memory_space<vmem>>, vector<1x1x1xf32>,
      %cst_31 = arith.constant 0.000000e+00 : f32
      %64 = vector.broadcast %cst_31 : f32 to vector<1x1x1xf32>
      %c0_32 = arith.constant 0 : index
      %c0_33 = arith.constant 0 : index
      %c0_34 = arith.constant 0 : index
      %65 = vector.load %arg5[%c0_32, %c0_33, %c0_34] : memref<1x1x1xf32, #tpu.memory_space<vmem>>, vector<1x1x1xf32>
      tpu.vector_store %arg5[%c0_32, %c0_33, %c0_34], %64 {strides = array<i32>} : memref<1x1x1xf32, #tpu.memory_space<vmem>>, vector<1x1x1xf32>,
    } else {
    }
    %c0 = arith.constant 0 : index
    %c0_1 = arith.constant 0 : index
    %3 = vector.load %arg2[%c0, %c0_1] : memref<16x32xf32, #tpu.memory_space<vmem>>, vector<16x32xf32>
    %c0_2 = arith.constant 0 : index
    %c0_3 = arith.constant 0 : index
    %4 = vector.load %arg3[%c0_2, %c0_3] : memref<16x1xi32, #tpu.memory_space<vmem>>, vector<16x1xi32>
    %c1_i32 = arith.constant 1 : i32
    %5 = arith.muli %arg0, %c1_i32 : i32
    %6 = arith.addi %5, %arg1 : i32
    %c16_i32 = arith.constant 16 : i32
    %7 = arith.muli %6, %c16_i32 : i32
    %8 = tpu.iota {dimensions = array<i32: 0>} : vector<16x1xi32>
    %9 = vector.broadcast %7 : i32 to vector<16x1xi32>
    %10 = arith.addi %9, %8 : vector<16x1xi32>
    %c0_i32_4 = arith.constant 0 : i32
    %11 = vector.broadcast %c0_i32_4 : i32 to vector<16x1xi32>
    %12 = arith.cmpi sge, %4, %11 : vector<16x1xi32>
    %c16_i32_5 = arith.constant 16 : i32
    %13 = vector.broadcast %c16_i32_5 : i32 to vector<16x1xi32>
    %14 = arith.cmpi slt, %10, %13 : vector<16x1xi32>
    %15 = arith.andi %12, %14 : vector<16x1xi1>
    %cst = arith.constant dense<0xFF800000> : vector<16xf32>
    %16 = vector.multi_reduction <maximumf>, %3, %cst [1] : vector<16x32xf32> to vector<16xf32>
    %17 = vector.shape_cast %16 : vector<16xf32> to vector<16x1xf32>
    %18 = vector.broadcast %17 : vector<16x1xf32> to vector<16x32xf32>
    %19 = arith.subf %3, %18 : vector<16x32xf32>
    %20 = math.exp %19 : vector<16x32xf32>
    %21 = tpu.iota {dimensions = array<i32: 1>} : vector<16x32xi32>
    %22 = vector.broadcast %4 : vector<16x1xi32> to vector<16x32xi32>
    %23 = arith.cmpi eq, %21, %22 : vector<16x32xi32>
    %cst_6 = arith.constant 0.000000e+00 : f32
    %24 = vector.broadcast %cst_6 : f32 to vector<16x32xf32>
    %25 = arith.select %23, %3, %24 : vector<16x32xi1>, vector<16x32xf32>
    %cst_7 = arith.constant dense<0.000000e+00> : vector<16xf32>
    %26 = vector.multi_reduction <add>, %20, %cst_7 [1] : vector<16x32xf32> to vector<16xf32>
    %27 = vector.shape_cast %26 : vector<16xf32> to vector<16x1xf32>
    %cst_8 = arith.constant dense<0.000000e+00> : vector<16xf32>
    %28 = vector.multi_reduction <add>, %25, %cst_8 [1] : vector<16x32xf32> to vector<16xf32>
    %29 = vector.shape_cast %28 : vector<16xf32> to vector<16x1xf32>
    %30 = math.log %27 : vector<16x1xf32>
    %31 = arith.addf %17, %30 : vector<16x1xf32>
    %32 = arith.subf %31, %29 : vector<16x1xf32>
    %cst_9 = arith.constant 0.000000e+00 : f32
    %33 = vector.broadcast %cst_9 : f32 to vector<16x1xf32>
    %34 = arith.subf %33, %32 : vector<16x1xf32>
    %35 = math.exp %34 : vector<16x1xf32>
    %cst_10 = arith.constant 1.000000e+00 : f32
    %36 = vector.broadcast %cst_10 : f32 to vector<16x1xf32>
    %37 = arith.subf %36, %35 : vector<16x1xf32>
    %38 = arith.mulf %37, %37 : vector<16x1xf32>
    %cst_11 = arith.constant 2.500000e-01 : f32
    %39 = vector.broadcast %cst_11 : f32 to vector<16x1xf32>
    %40 = arith.mulf %39, %38 : vector<16x1xf32>
    %41 = arith.mulf %40, %32 : vector<16x1xf32>
    %cst_12 = arith.constant 0.000000e+00 : f32
    %42 = vector.broadcast %cst_12 : f32 to vector<16x1xf32>
    %43 = arith.select %15, %41, %42 : vector<16x1xi1>, vector<16x1xf32>
    %c0_13 = arith.constant 0 : index
    %c0_14 = arith.constant 0 : index
    %c0_15 = arith.constant 0 : index
    %44 = vector.load %arg4[%c0_13, %c0_14, %c0_15] : memref<1x1x1xf32, #tpu.memory_space<vmem>>, vector<1x1x1xf32>
    %45 = vector.shape_cast %43 : vector<16x1xf32> to vector<1x16x1xf32>
    %cst_16 = arith.constant dense<0.000000e+00> : vector<1xf32>
    %46 = vector.multi_reduction <add>, %45, %cst_16 [1, 2] : vector<1x16x1xf32> to vector<1xf32>
    %47 = vector.shape_cast %46 : vector<1xf32> to vector<1x1x1xf32>
    %48 = vector.extract %47[0, 0, 0] : f32 from vector<1x1x1xf32>
    %49 = vector.broadcast %48 : f32 to vector<1x1x1xf32>
    %50 = arith.addf %44, %49 : vector<1x1x1xf32>
    %c0_17 = arith.constant 0 : index
    %c0_18 = arith.constant 0 : index
    %c0_19 = arith.constant 0 : index
    %51 = vector.load %arg4[%c0_17, %c0_18, %c0_19] : memref<1x1x1xf32, #tpu.memory_space<vmem>>, vector<1x1x1xf32>
    tpu.vector_store %arg4[%c0_17, %c0_18, %c0_19], %50 {strides = array<i32>} : memref<1x1x1xf32, #tpu.memory_space<vmem>>, vector<1x1x1xf32>,
    %c0_20 = arith.constant 0 : index
    %c0_21 = arith.constant 0 : index
    %c0_22 = arith.constant 0 : index
    %52 = vector.load %arg5[%c0_20, %c0_21, %c0_22] : memref<1x1x1xf32, #tpu.memory_space<vmem>>, vector<1x1x1xf32>
    %53 = arith.extui %15 : vector<16x1xi1> to vector<16x1xi32>
    %54 = arith.sitofp %53 : vector<16x1xi32> to vector<16x1xf32>
    %55 = vector.shape_cast %54 : vector<16x1xf32> to vector<1x16x1xf32>
    %cst_23 = arith.constant dense<0.000000e+00> : vector<1xf32>
    %56 = vector.multi_reduction <add>, %55, %cst_23 [1, 2] : vector<1x16x1xf32> to vector<1xf32>
    %57 = vector.shape_cast %56 : vector<1xf32> to vector<1x1x1xf32>
    %58 = vector.extract %57[0, 0, 0] : f32 from vector<1x1x1xf32>
    %59 = vector.broadcast %58 : f32 to vector<1x1x1xf32>
    %60 = arith.addf %52, %59 : vector<1x1x1xf32>
    %c0_24 = arith.constant 0 : index
    %c0_25 = arith.constant 0 : index
    %c0_26 = arith.constant 0 : index
    %61 = vector.load %arg5[%c0_24, %c0_25, %c0_26] : memref<1x1x1xf32, #tpu.memory_space<vmem>>, vector<1x1x1xf32>
    tpu.vector_store %arg5[%c0_24, %c0_25, %c0_26], %60 {strides = array<i32>} : memref<1x1x1xf32, #tpu.memory_space<vmem>>, vector<1x1x1xf32>,
    return
  }
  func.func @transform_0(%arg0: i32, %arg1: i32) -> (i32, i32) {
    %c1_i32 = arith.constant 1 : i32
    %0 = arith.muli %arg0, %c1_i32 : i32
    %1 = arith.addi %0, %arg1 : i32
    %c0_i32 = arith.constant 0 : i32
    %c0_i32_0 = arith.constant 0 : i32
    return %1, %c0_i32 : i32, i32
  }
  func.func @transform_1(%arg0: i32, %arg1: i32) -> (i32, i32) {
    %c1_i32 = arith.constant 1 : i32
    %0 = arith.muli %arg0, %c1_i32 : i32
    %1 = arith.addi %0, %arg1 : i32
    %c0_i32 = arith.constant 0 : i32
    %c0_i32_0 = arith.constant 0 : i32
    return %1, %c0_i32 : i32, i32
  }
  func.func @transform_2(%arg0: i32, %arg1: i32) -> (i32, i32, i32) {
    %c0_i32 = arith.constant 0 : i32
    %c0_i32_0 = arith.constant 0 : i32
    %c0_i32_1 = arith.constant 0 : i32
    return %arg0, %c0_i32, %c0_i32_0 : i32, i32, i32
  }
  func.func @transform_3(%arg0: i32, %arg1: i32) -> (i32, i32, i32) {
    %c0_i32 = arith.constant 0 : i32
    %c0_i32_0 = arith.constant 0 : i32
    %c0_i32_1 = arith.constant 0 : i32
    return %arg0, %c0_i32, %c0_i32_0 : i32, i32, i32
  }
}

</mosaic_0001>

<llo_original>
// kernel: tpu_custom_call.1
$region0: #{tpu_custom_call.1}
  #allocation0 [shape = 'u32[]', space=smem, size = 0x4, offset = 0x4, fixed_abs, tag = 'smem constant byte address 0x4 - core index']
  #allocation1 [shape = 'u32[144,128]{1,0:T(1,128)}', space=vmem, size = 0x12000, scoped, tag = 'internal scratch']
  %s0 = inlined_call_operand.vmem [shape: f32[16,32], index: 0, kind: input, shape index: {}]
  %s1 = inlined_call_operand.vmem [shape: s32[16,1], index: 1, kind: input, shape index: {}]
  %s2 = inlined_call_operand.hbm [shape: f32[1,1,1], index: 2, kind: output, shape index: {0}]
  %s3 = inlined_call_operand.hbm [shape: f32[1,1,1], index: 3, kind: output, shape index: {1}]
  %4 = xla_tuple %s2, %s3
  %s5 = sld [smem:[#allocation0]]
  $region30: #{tpu_custom_call.1} parent=0
    _
  %s7 = ssub.s32 1, %s5
  %s8 = scalar_select 0, %s7, %s5
  $region1: #{tpu_custom_call.1} parent=0
    #allocation2 [shape = 'u8[512]{0}', space=vmem, size = 0x400, scoped, tag = 'output window, operand 0, single buffered']
    #allocation3 [shape = 's32[1]{0}', space=sflag, size = 0x4, scoped, tag = 'scoped memory for tpu_custom_call.1']
    #allocation4 [shape = 'u8[512]{0}', space=vmem, size = 0x400, scoped, tag = 'output window, operand 1, single buffered']
    #allocation5 [shape = 's32[1]{0}', space=sflag, size = 0x4, scoped, tag = 'scoped memory for tpu_custom_call.1']
    %9 = vsyncpa [#allocation3], 0
    %10 = vsyncpa [#allocation5], 0
    // Predicated region
    $region2: #{tpu_custom_call.1} parent=1 // pred_check
      _
    $region3: #{tpu_custom_call.1} parent=1 // pred_check_branch
      %12 = sbr.rel (0) target = $region5
    $region4: #{tpu_custom_call.1} parent=1 // pred_region
      %s13 = sadd.s32 0, 0
      %s14 = smul.u32 2, %s13
      %p15 = scmp.lt.s32.totalorder %s14, 1
      %s16 = scalar_select %p15, %s14, 1
      %s17 = smul.addr %s16, 8
      %s18 = scalar_lea.vmem %s0, %s17
      %s19 = sadd.s32 0, 0
      %s20 = smul.u32 2, %s19
    $region5: #{tpu_custom_call.1} parent=1 // pred_fallthru
      _
    // Predicated region
    $region6: #{tpu_custom_call.1} parent=1 // pred_check
      _
    $region7: #{tpu_custom_call.1} parent=1 // pred_check_branch
      %22 = sbr.rel (0) target = $region9
    $region8: #{tpu_custom_call.1} parent=1 // pred_region
      %s23 = sadd.s32 0, 0
      %s24 = smul.u32 2, %s23
      %p25 = scmp.lt.s32.totalorder %s24, 1
      %s26 = scalar_select %p25, %s24, 1
      %s27 = smul.addr %s26, 8
      %s28 = scalar_lea.vmem %s1, %s27
      %s29 = sadd.s32 0, 0
      %s30 = smul.u32 2, %s29
    $region9: #{tpu_custom_call.1} parent=1 // pred_fallthru
      _
    %s31 = sadd.s32 0, 0
    %s32 = smul.u32 2, %s31
    %p33 = scmp.lt.s32.totalorder %s32, 1
    %s34 = scalar_select %p33, %s32, 1
    %s35 = smul.addr %s34, 8
    %s36 = scalar_lea.vmem %s0, %s35
    %s37 = sadd.s32 0, 0
    %s38 = smul.u32 2, %s37
    %p39 = scmp.lt.s32.totalorder %s38, 1
    %s40 = scalar_select %p39, %s38, 1
    %s41 = smul.addr %s40, 8
    %s42 = scalar_lea.vmem %s1, %s41
    %s43 = sadd.s32 0, 0
    %s44 = smul.u32 2, %s43
    %p45 = scmp.lt.s32.totalorder %s44, 1
    %s46 = scalar_select %p45, %s44, 1
    %s47 = smul.addr %s46, 8
    %s48 = scalar_lea.vmem %s0, %s47
    %s49 = sadd.s32 0, 0
    %s50 = smul.u32 2, %s49
    %s51 = sadd.s32 0, 0
    %s52 = smul.u32 2, %s51
    %p53 = scmp.lt.s32.totalorder %s52, 1
    %s54 = scalar_select %p53, %s52, 1
    %s55 = smul.addr %s54, 8
    %s56 = scalar_lea.vmem %s1, %s55
    %s57 = sadd.s32 0, 0
    %s58 = smul.u32 2, %s57
    %p59 = scmp.eq.s32.totalorder 0, 0
    // Predicated region
    $region10: #{tpu_custom_call.1} parent=1 // pred_check
      %p60 = pneg %p59
    $region11: #{tpu_custom_call.1} parent=1 // pred_check_branch
      %62 = sbr.rel (%p60) target = $region13
    $region12: #{tpu_custom_call.1} parent=1 // pred_region
      %vm63 = vcmask 0
      %64 = vst.msk [vmem:[#allocation2] sm:$0x1] %vm63, 0.0
      %65 = vst.msk [vmem:[#allocation4] sm:$0x1] %vm63, 0.0
    $region13: #{tpu_custom_call.1} parent=1 // pred_fallthru
      _
    %v66 = vld [vmem:[%s48] sm:$0xff]
    %v67 = vld [vmem:[%s48 + $0x8] sm:$0xff]
    %v68 = vld [vmem:[%s56] sm:$0xff]
    %v69 = vld [vmem:[%s56 + $0x8] sm:$0xff]
    %s70 = sadd.s32 0, 0
    %s71 = smul.u32 %s70, 16
    %v72 = vlaneseq
    %v73 = vshrl.u32 %v72, 7
    %v74 = vadd.s32 %v73, 8
    %v75 = vstv %s71
    %v76 = vadd.s32 %v75, %v73
    %v77 = vadd.s32 %v75, %v74
    %vm78 = vcmp.ge.s32.totalorder %v68, 0
    %vm79 = vcmp.ge.s32.totalorder %v69, 0
    %vm80 = vcmp.lt.s32.totalorder %v76, 16
    %vm81 = vcmp.lt.s32.totalorder %v77, 16
    %vm82 = vmand %vm78, %vm80
    %vm83 = vmand %vm79, %vm81
    %vm84 = vcmask 261120
    %v85 = vsel %vm84, %v66, -inf
    %86 = vmax.xlane.f32.xlu0 %v85
    %v87 = vpop.xlane.xlu0 %86
    %v88 = vsel %vm84, %v67, -inf
    %89 = vmax.xlane.f32.xlu0 %v88
    %v90 = vpop.xlane.xlu0 %89
    %v91 = vsub.f32 %v66, %v87
    %v92 = vsub.f32 %v67, %v90
    %v93 = vmul.f32 %v91, 1.442695
    %v94 = vpow.pop %v93
    %v95 = vmul.f32 %v92, 1.442695
    %v96 = vpow.pop %v95
    %v97 = vlaneseq
    %v98 = vand.u32 %v97, 127
    %99 = vset.pattern.permute.xlu0 0
    %100 = vperm.xlu0 %99, %v68
    %v101 = vpop.permute.xlu0 %100
    %102 = vset.pattern.permute.xlu0 0
    %103 = vperm.xlu0 %102, %v69
    %v104 = vpop.permute.xlu0 %103
    %vm105 = vcmp.eq.s32.totalorder %v98, %v101
    %vm106 = vcmp.eq.s32.totalorder %v98, %v104
    %v107 = vsel %vm105, %v66, 0.0
    %v108 = vsel %vm106, %v67, 0.0
    %v109 = vsel %vm84, %v94, 0.0
    %110 = vadd.xlane.f32.xlu0 %v109
    %v111 = vpop.xlane.xlu0 %110
    %v112 = vsel %vm84, %v96, 0.0
    %113 = vadd.xlane.f32.xlu0 %v112
    %v114 = vpop.xlane.xlu0 %113
    %v115 = vsel %vm84, %v107, 0.0
    %116 = vadd.xlane.f32.xlu0 %v115
    %v117 = vpop.xlane.xlu0 %116
    %v118 = vsel %vm84, %v108, 0.0
    %119 = vadd.xlane.f32.xlu0 %v118
    %v120 = vpop.xlane.xlu0 %119
    %v121 = vlog2.pop %v111
    %v122 = vmul.f32 %v121, 0.6931472
    %v123 = vlog2.pop %v114
    %v124 = vmul.f32 %v123, 0.6931472
    %v125 = vadd.f32 %v87, %v122
    %v126 = vadd.f32 %v90, %v124
    %v127 = vsub.f32 %v125, %v117
    %v128 = vsub.f32 %v126, %v120
    %v129 = vsub.f32 0.0, %v127
    %v130 = vsub.f32 0.0, %v128
    %v131 = vmul.f32 %v129, 1.442695
    %v132 = vpow.pop %v131
    %v133 = vmul.f32 %v130, 1.442695
    %v134 = vpow.pop %v133
    %v135 = vsub.f32 1.0, %v132
    %v136 = vsub.f32 1.0, %v134
    %v137 = vmul.f32 %v135, %v135
    %v138 = vmul.f32 %v136, %v136
    %v139 = vmul.f32 %v137, 0.25
    %v140 = vmul.f32 %v138, 0.25
    %v141 = vmul.f32 %v139, %v127
    %v142 = vmul.f32 %v140, %v128
    %v143 = vsel %vm82, %v141, 0.0
    %v144 = vsel %vm83, %v142, 0.0
    %v145 = vld [vmem:[#allocation2] sm:$0x1]
    %vm146 = vcmask 7168
    %v147 = vsel %vm146, %v143, 0.0
    %v148 = vsel %vm146, %v144, 0.0
    %v149 = vadd.f32 %v147, %v148
    %150 = vadd.xlane.f32.xlu0 %v149
    %v151 = vpop.xlane.xlu0 %150
    %v152 = vrot.slane %v151, 4
    %v153 = vadd.f32 %v151, %v152
    %v154 = vrot.slane %v153, 2
    %v155 = vadd.f32 %v153, %v154
    %v156 = vrot.slane %v155, 1
    %v157 = vadd.f32 %v155, %v156
    %s158 = vtos %v157
    %v159 = vstv %s158
    %v160 = vadd.f32 %v145, %v159
    %vm161 = vcmask 0
    %162 = vst.msk [vmem:[#allocation2] sm:$0x1] %vm161, %v160
    %v163 = vld [vmem:[#allocation4] sm:$0x1]
    %v164 = vsel %vm82, 1, 0
    %v165 = vsel %vm83, 1, 0
    %v166 = vcvt.s32.f32 %v164
    %v167 = vcvt.s32.f32 %v165
    %v168 = vsel %vm146, %v166, 0.0
    %v169 = vsel %vm146, %v167, 0.0
    %v170 = vadd.f32 %v168, %v169
    %171 = vadd.xlane.f32.xlu0 %v170
    %v172 = vpop.xlane.xlu0 %171
    %v173 = vrot.slane %v172, 4
    %v174 = vadd.f32 %v172, %v173
    %v175 = vrot.slane %v174, 2
    %v176 = vadd.f32 %v174, %v175
    %v177 = vrot.slane %v176, 1
    %v178 = vadd.f32 %v176, %v177
    %s179 = vtos %v178
    %v180 = vstv %s179
    %v181 = vadd.f32 %v163, %v180
    %182 = vst.msk [vmem:[#allocation4] sm:$0x1] %vm161, %v181
    // Predicated region
    $region14: #{tpu_custom_call.1} parent=1 // pred_check
      _
    $region15: #{tpu_custom_call.1} parent=1 // pred_check_branch
      %184 = sbr.rel (0) target = $region17
    $region16: #{tpu_custom_call.1} parent=1 // pred_region
      %s186 = ssub.s32 16, 16
      %187 = vsyncadd [#allocation3], %s186
      %s189 = sshll.u32 [#allocation2], 4
      %s190 = int_to_ptr.vmem [resolvable:$true] %s189
      %192 = dma.vmem_to_hbm [thread:$0]  %s190, 16, %s2, [#allocation3]
    $region17: #{tpu_custom_call.1} parent=1 // pred_fallthru
      _
    // Predicated region
    $region18: #{tpu_custom_call.1} parent=1 // pred_check
      _
    $region19: #{tpu_custom_call.1} parent=1 // pred_check_branch
      %194 = sbr.rel (0) target = $region21
    $region20: #{tpu_custom_call.1} parent=1 // pred_region
      %s196 = ssub.s32 16, 16
      %197 = vsyncadd [#allocation5], %s196
      %s199 = sshll.u32 [#allocation4], 4
      %s200 = int_to_ptr.vmem [resolvable:$true] %s199
      %202 = dma.vmem_to_hbm [thread:$0]  %s200, 16, %s3, [#allocation5]
    $region21: #{tpu_custom_call.1} parent=1 // pred_fallthru
      _
    // Predicated region
    $region22: #{tpu_custom_call.1} parent=1 // pred_check
      _
    $region23: #{tpu_custom_call.1} parent=1 // pred_check_branch
      %204 = sbr.rel (0) target = $region25
    $region24: #{tpu_custom_call.1} parent=1 // pred_region
      %205 = dma.done [#allocation3], 16
    $region25: #{tpu_custom_call.1} parent=1 // pred_fallthru
      _
    // Predicated region
    $region26: #{tpu_custom_call.1} parent=1 // pred_check
      _
    $region27: #{tpu_custom_call.1} parent=1 // pred_check_branch
      %207 = sbr.rel (0) target = $region29
    $region28: #{tpu_custom_call.1} parent=1 // pred_region
      %208 = dma.done [#allocation5], 16
    $region29: #{tpu_custom_call.1} parent=1 // pred_fallthru
      _
    %209 = vsyncpa [#allocation3], 1
    %210 = vsyncpa [#allocation5], 1

</llo_original>
